<compile_context>
chip_gen: v5e
topology: v5e:2x2
jax: 0.10.0
libtpu: 0.0.40
codegen_flags: <defaults>
</compile_context>

<pallas_src>
import functools

import jax
import jax.numpy as jnp
from jax.experimental import pallas as pl
from jax.experimental.pallas import tpu as pltpu


def _device_kind():
    try:
        return jax.devices()[0].device_kind.lower()
    except Exception:  # pragma: no cover - defensive; fall back to safe defaults
        return ""


def _ce_soft_label_kernel(logits_ref, labels_ref, out_ref, acc_ref, *,
                          total_n, tile_n, tiles_per_part,
                          labels_sum_to_one, use_mxu_sums):
    p = pl.program_id(0)          # batch partition ("parallel" -> megacore on v7x)
    j = pl.program_id(1)          # row-tile index within the partition (reduction)
    nj = pl.num_programs(1)

    @pl.when(j == 0)
    def _init():
        acc_ref[...] = jnp.zeros_like(acc_ref)

    x = logits_ref[...].astype(jnp.float32)   # (tile_n, C)
    t = labels_ref[...].astype(jnp.float32)   # (tile_n, C)

    # Cross entropy with soft targets, without materializing logp:
    #   -sum_c t*(z - lse) = sum_c(t)*lse - sum_c(t*z),   z = x - max_c(x)
    m = jnp.max(x, axis=-1, keepdims=True)    # per-row max stays on the XLU
    z = x - m

    if use_mxu_sums:
        # Lane reductions on the (otherwise idle) MXU: frees the 2 XLU slots.
        ones = jnp.ones((z.shape[-1], 1), jnp.float32)

        def lane_sum(a):
            return jnp.dot(a, ones, preferred_element_type=jnp.float32)
    else:
        def lane_sum(a):
            return jnp.sum(a, axis=-1, keepdims=True)

    lse = jnp.log(lane_sum(jnp.exp(z)))                     # (tile_n, 1)
    sum_tz = lane_sum(t * z)                                # (tile_n, 1)
    if labels_sum_to_one:
        # Fast path (opt-in): skips one lane reduce + one multiply.
        row_loss = lse - sum_tz
    else:
        # General formula; PyTorch accepts unnormalized probability targets.
        sum_t = lane_sum(t)
        row_loss = sum_t * lse - sum_tz                     # (tile_n, 1)

    # Mask rows outside the real batch (partial edge tile / replayed tiles).
    row0 = (p * tiles_per_part + j) * tile_n
    rows = row0 + jax.lax.broadcasted_iota(jnp.int32, (tile_n, 1), 0)
    row_loss = jnp.where(rows < total_n, row_loss, 0.0)

    # Sublane-dense accumulation; scalar reduce happens only in the epilogue.
    acc_ref[...] += row_loss

    @pl.when(j == nj - 1)
    def _fini():
        total = jnp.sum(acc_ref[...])
        row_i = jax.lax.broadcasted_iota(jnp.int32, (8, 1), 0)
        out_ref[...] = jnp.where(row_i == 0, total, 0.0)    # partial sum at [0, 0]


def label_smoothing_cross_entropy(logits, soft_labels, *,
                                  max_rows=4096,
                                  vmem_limit_bytes=None,
                                  num_parts=None,
                                  labels_sum_to_one=False,
                                  use_mxu_sums=False):
    """Mean soft-label cross entropy (matches nn.CrossEntropyLoss with prob targets)."""
    N, C = logits.shape
    assert soft_labels.shape == (N, C)

    kind = _device_kind()

    # Chip-gated VMEM budget: v5e/v6e/v4 have 128 MiB physical (defaults 16/32 MiB
    # are far too small); v7x has only 64 MiB, so cap at 48 MiB there / if unknown.
    if vmem_limit_bytes is None:
        if "v7" in kind:
            vmem_limit_bytes = 48 * 1024 * 1024
        elif any(s in kind for s in ("v4", "v5", "v6")):
            vmem_limit_bytes = 96 * 1024 * 1024
        else:
            vmem_limit_bytes = 48 * 1024 * 1024

    # Bytes per row of tile: 2 pipeline buffers for each of the 2 input streams
    # plus ~4 full-width f32 compute temporaries (x, z, exp(z), t*z).
    in_itemsize = (jnp.dtype(logits.dtype).itemsize
                   + jnp.dtype(soft_labels.dtype).itemsize)
    per_row_bytes = 2 * C * in_itemsize + 4 * C * 4
    budget = max(vmem_limit_bytes - (8 << 20), 4 << 20)     # leave headroom
    rows_by_vmem = max(8, (budget // per_row_bytes) // 8 * 8)

    cap = max(8, min(max_rows, rows_by_vmem))
    if N <= cap:
        tile_n = N                 # full first dim -> always a legal block shape
    else:
        tile_n = cap               # multiple of 8
    n_tiles = pl.cdiv(N, tile_n)

    # 2-way batch partition only pays on 2-TensorCore chips (v7x megacore).
    if num_parts is None:
        num_parts = 2 if ("v7" in kind and n_tiles >= 2) else 1
    num_parts = max(1, min(num_parts, n_tiles))
    tiles_per_part = pl.cdiv(n_tiles, num_parts)

    def in_index_map(p, j):
        # Clamp so over-covered tiles re-read the last valid block (rows masked).
        return (jnp.minimum(p * tiles_per_part + j, n_tiles - 1), 0)

    kernel = functools.partial(_ce_soft_label_kernel,
                               total_n=N, tile_n=tile_n,
                               tiles_per_part=tiles_per_part,
                               labels_sum_to_one=labels_sum_to_one,
                               use_mxu_sums=use_mxu_sums)

    partials = pl.pallas_call(
        kernel,
        out_shape=jax.ShapeDtypeStruct((num_parts * 8, 1), jnp.float32),
        grid_spec=pltpu.PrefetchScalarGridSpec(
            num_scalar_prefetch=0,
            grid=(num_parts, tiles_per_part),
            in_specs=[
                pl.BlockSpec((tile_n, C), in_index_map),
                pl.BlockSpec((tile_n, C), in_index_map),
            ],
            out_specs=pl.BlockSpec((8, 1), lambda p, j: (p, 0)),
            scratch_shapes=[pltpu.VMEM((tile_n, 1), jnp.float32)],
        ),
        compiler_params=pltpu.CompilerParams(
            dimension_semantics=("parallel", "arbitrary"),
            vmem_limit_bytes=vmem_limit_bytes,
        ),
    )(logits, soft_labels)

    # Each partition wrote its partial sum at row p*8; other rows are zero.
    return jnp.sum(partials) / N


def _reference(logits, soft_labels):
    logp = jax.nn.log_softmax(logits.astype(jnp.float32), axis=-1)
    return jnp.mean(-jnp.sum(soft_labels.astype(jnp.float32) * logp, axis=-1))


if __name__ == "__main__":
    key = jax.random.PRNGKey(0)
    k1, k2, k3, k4 = jax.random.split(key, 4)
    eps = 0.1

    # Test 1: small single-tile path, f32, exact VPU/XLU lane sums.
    N, C = 16, 128
    logits = jax.random.normal(k1, (N, C), dtype=jnp.float32)
    hard = jax.random.randint(k2, (N,), 0, C)
    soft_labels = jax.nn.one_hot(hard, C, dtype=jnp.float32) * (1.0 - eps) + eps / C

    loss = jax.block_until_ready(label_smoothing_cross_entropy(logits, soft_labels))
    ref = _reference(logits, soft_labels)
    assert jnp.allclose(loss, ref, atol=1e-5, rtol=1e-5), (loss, ref)

    # Test 2: multi-tile + partial edge tile + bf16 inputs (half HBM bytes) +
    # MXU-offloaded lane sums.
    N2, C2 = 300, 128
    logits2 = jax.random.normal(k3, (N2, C2), dtype=jnp.float32)
    hard2 = jax.random.randint(k4, (N2,), 0, C2)
    soft2 = jax.nn.one_hot(hard2, C2, dtype=jnp.float32) * (1.0 - eps) + eps / C2
    logits2_bf = logits2.astype(jnp.bfloat16)
    soft2_bf = soft2.astype(jnp.bfloat16)

    loss2 = jax.block_until_ready(
        label_smoothing_cross_entropy(logits2_bf, soft2_bf,
                                      max_rows=64, use_mxu_sums=True))
    ref2 = _reference(logits2_bf, soft2_bf)
    assert jnp.allclose(loss2, ref2, atol=2e-2, rtol=2e-2), (loss2, ref2)

    print("KERNEL_OK")
</pallas_src>

<mosaic_0001>
module attributes {stable_mosaic.version = 11 : i64} {
  func.func @_ce_soft_label_kernel(%arg0: i32, %arg1: i32, %arg2: memref<16x128xf32, #tpu.memory_space<vmem>>, %arg3: memref<16x128xf32, #tpu.memory_space<vmem>>, %arg4: memref<8x1xf32, #tpu.memory_space<vmem>>, %arg5: memref<16x1xf32, #tpu.memory_space<vmem>>) attributes {dimension_semantics = [#tpu.dimension_semantics<parallel>, #tpu.dimension_semantics<arbitrary>], iteration_bounds = array<i64: 1, 1>, scalar_prefetch = 0 : i64, scratch_operands = 1 : i64, tpu.core_type = #tpu.core_type<tc>, window_params = [{transform_indices = @transform_0, window_bounds = array<i64: 16, 128>}, {transform_indices = @transform_1, window_bounds = array<i64: 16, 128>}, {transform_indices = @transform_2, window_bounds = array<i64: 8, 1>}]} {
    %c0_i32 = arith.constant 0 : i32
    %0 = arith.cmpi eq, %arg1, %c0_i32 : i32
    %1 = arith.extui %0 : i1 to i32
    %c0_i32_0 = arith.constant 0 : i32
    %2 = arith.cmpi ne, %1, %c0_i32_0 : i32
    scf.if %2 {
      %cst_15 = arith.constant 0.000000e+00 : f32
      %36 = vector.broadcast %cst_15 : f32 to vector<16x1xf32>
      %c0_16 = arith.constant 0 : index
      %c0_17 = arith.constant 0 : index
      %37 = vector.load %arg5[%c0_16, %c0_17] : memref<16x1xf32, #tpu.memory_space<vmem>>, vector<16x1xf32>
      tpu.vector_store %arg5[%c0_16, %c0_17], %36 {strides = array<i32>} : memref<16x1xf32, #tpu.memory_space<vmem>>, vector<16x1xf32>,
    } else {
    }
    %c0 = arith.constant 0 : index
    %c0_1 = arith.constant 0 : index
    %3 = vector.load %arg2[%c0, %c0_1] : memref<16x128xf32, #tpu.memory_space<vmem>>, vector<16x128xf32>
    %c0_2 = arith.constant 0 : index
    %c0_3 = arith.constant 0 : index
    %4 = vector.load %arg3[%c0_2, %c0_3] : memref<16x128xf32, #tpu.memory_space<vmem>>, vector<16x128xf32>
    %cst = arith.constant dense<0xFF800000> : vector<16xf32>
    %5 = vector.multi_reduction <maximumf>, %3, %cst [1] : vector<16x128xf32> to vector<16xf32>
    %6 = vector.shape_cast %5 : vector<16xf32> to vector<16x1xf32>
    %7 = vector.broadcast %6 : vector<16x1xf32> to vector<16x128xf32>
    %8 = arith.subf %3, %7 : vector<16x128xf32>
    %9 = math.exp %8 : vector<16x128xf32>
    %cst_4 = arith.constant dense<0.000000e+00> : vector<16xf32>
    %10 = vector.multi_reduction <add>, %9, %cst_4 [1] : vector<16x128xf32> to vector<16xf32>
    %11 = vector.shape_cast %10 : vector<16xf32> to vector<16x1xf32>
    %12 = math.log %11 : vector<16x1xf32>
    %13 = arith.mulf %4, %8 : vector<16x128xf32>
    %cst_5 = arith.constant dense<0.000000e+00> : vector<16xf32>
    %14 = vector.multi_reduction <add>, %13, %cst_5 [1] : vector<16x128xf32> to vector<16xf32>
    %15 = vector.shape_cast %14 : vector<16xf32> to vector<16x1xf32>
    %cst_6 = arith.constant dense<0.000000e+00> : vector<16xf32>
    %16 = vector.multi_reduction <add>, %4, %cst_6 [1] : vector<16x128xf32> to vector<16xf32>
    %17 = vector.shape_cast %16 : vector<16xf32> to vector<16x1xf32>
    %18 = arith.mulf %17, %12 : vector<16x1xf32>
    %19 = arith.subf %18, %15 : vector<16x1xf32>
    %c1_i32 = arith.constant 1 : i32
    %20 = arith.muli %arg0, %c1_i32 : i32
    %21 = arith.addi %20, %arg1 : i32
    %c16_i32 = arith.constant 16 : i32
    %22 = arith.muli %21, %c16_i32 : i32
    %23 = tpu.iota {dimensions = array<i32: 0>} : vector<16x1xi32>
    %24 = vector.broadcast %22 : i32 to vector<16x1xi32>
    %25 = arith.addi %24, %23 : vector<16x1xi32>
    %c16_i32_7 = arith.constant 16 : i32
    %26 = vector.broadcast %c16_i32_7 : i32 to vector<16x1xi32>
    %27 = arith.cmpi slt, %25, %26 : vector<16x1xi32>
    %cst_8 = arith.constant 0.000000e+00 : f32
    %28 = vector.broadcast %cst_8 : f32 to vector<16x1xf32>
    %29 = arith.select %27, %19, %28 : vector<16x1xi1>, vector<16x1xf32>
    %c0_9 = arith.constant 0 : index
    %c0_10 = arith.constant 0 : index
    %30 = vector.load %arg5[%c0_9, %c0_10] : memref<16x1xf32, #tpu.memory_space<vmem>>, vector<16x1xf32>
    %31 = arith.addf %30, %29 : vector<16x1xf32>
    %c0_11 = arith.constant 0 : index
    %c0_12 = arith.constant 0 : index
    %32 = vector.load %arg5[%c0_11, %c0_12] : memref<16x1xf32, #tpu.memory_space<vmem>>, vector<16x1xf32>
    tpu.vector_store %arg5[%c0_11, %c0_12], %31 {strides = array<i32>} : memref<16x1xf32, #tpu.memory_space<vmem>>, vector<16x1xf32>,
    %c0_i32_13 = arith.constant 0 : i32
    %33 = arith.cmpi eq, %arg1, %c0_i32_13 : i32
    %34 = arith.extui %33 : i1 to i32
    %c0_i32_14 = arith.constant 0 : i32
    %35 = arith.cmpi ne, %34, %c0_i32_14 : i32
    scf.if %35 {
      %c0_15 = arith.constant 0 : index
      %c0_16 = arith.constant 0 : index
      %36 = vector.load %arg5[%c0_15, %c0_16] : memref<16x1xf32, #tpu.memory_space<vmem>>, vector<16x1xf32>
      %37 = vector.shape_cast %36 : vector<16x1xf32> to vector<1x16x1xf32>
      %cst_17 = arith.constant dense<0.000000e+00> : vector<1xf32>
      %38 = vector.multi_reduction <add>, %37, %cst_17 [1, 2] : vector<1x16x1xf32> to vector<1xf32>
      %39 = vector.shape_cast %38 : vector<1xf32> to vector<1x1x1xf32>
      %40 = vector.extract %39[0, 0, 0] : f32 from vector<1x1x1xf32>
      %41 = tpu.iota {dimensions = array<i32: 0>} : vector<8x1xi32>
      %c0_i32_18 = arith.constant 0 : i32
      %42 = vector.broadcast %c0_i32_18 : i32 to vector<8x1xi32>
      %43 = arith.cmpi eq, %41, %42 : vector<8x1xi32>
      %cst_19 = arith.constant 0.000000e+00 : f32
      %44 = vector.broadcast %40 : f32 to vector<8x1xf32>
      %45 = vector.broadcast %cst_19 : f32 to vector<8x1xf32>
      %46 = arith.select %43, %44, %45 : vector<8x1xi1>, vector<8x1xf32>
      %c0_20 = arith.constant 0 : index
      %c0_21 = arith.constant 0 : index
      %47 = vector.load %arg4[%c0_20, %c0_21] : memref<8x1xf32, #tpu.memory_space<vmem>>, vector<8x1xf32>
      tpu.vector_store %arg4[%c0_20, %c0_21], %46 {strides = array<i32>} : memref<8x1xf32, #tpu.memory_space<vmem>>, vector<8x1xf32>,
    } else {
    }
    return
  }
  func.func @transform_0(%arg0: i32, %arg1: i32) -> (i32, i32) {
    %c1_i32 = arith.constant 1 : i32
    %0 = arith.muli %arg0, %c1_i32 : i32
    %1 = arith.addi %0, %arg1 : i32
    %c0_i32 = arith.constant 0 : i32
    %2 = arith.minsi %1, %c0_i32 : i32
    %c0_i32_0 = arith.constant 0 : i32
    %c0_i32_1 = arith.constant 0 : i32
    return %2, %c0_i32_0 : i32, i32
  }
  func.func @transform_1(%arg0: i32, %arg1: i32) -> (i32, i32) {
    %c1_i32 = arith.constant 1 : i32
    %0 = arith.muli %arg0, %c1_i32 : i32
    %1 = arith.addi %0, %arg1 : i32
    %c0_i32 = arith.constant 0 : i32
    %2 = arith.minsi %1, %c0_i32 : i32
    %c0_i32_0 = arith.constant 0 : i32
    %c0_i32_1 = arith.constant 0 : i32
    return %2, %c0_i32_0 : i32, i32
  }
  func.func @transform_2(%arg0: i32, %arg1: i32) -> (i32, i32) {
    %c0_i32 = arith.constant 0 : i32
    %c0_i32_0 = arith.constant 0 : i32
    return %arg0, %c0_i32 : i32, i32
  }
}

</mosaic_0001>

<llo_original>
// kernel: tpu_custom_call.1
$region0: #{tpu_custom_call.1}
  #allocation0 [shape = 'u32[]', space=smem, size = 0x4, offset = 0x4, fixed_abs, tag = 'smem constant byte address 0x4 - core index']
  #allocation1 [shape = 'u32[72,128]{1,0:T(1,128)}', space=vmem, size = 0x9000, scoped, tag = 'internal scratch']
  #allocation2 [shape = 'f32[16,1]{1,0:T(8,128)}', space=vmem, size = 0x2000, scoped, tag = 'scratch operand']
  %s0 = inlined_call_operand.hbm [shape: f32[16,128], index: 0, kind: input, shape index: {}]
  %s1 = inlined_call_operand.hbm [shape: f32[16,128], index: 1, kind: input, shape index: {}]
  %s2 = inlined_call_operand.vmem [shape: f32[8,1], index: 2, kind: output, shape index: {}]
  %s3 = sld [smem:[#allocation0]]
  $region34: #{tpu_custom_call.1} parent=0
    _
  %s5 = ssub.s32 1, %s3
  %s6 = scalar_select 0, %s5, %s3
  $region1: #{tpu_custom_call.1} parent=0
    #allocation3 [shape = 'u8[8192]{0}', space=vmem, size = 0x2000, scoped, tag = 'input window, operand 0, single buffered']
    #allocation4 [shape = 's32[1]{0}', space=sflag, size = 0x4, scoped, tag = 'scoped memory for tpu_custom_call.1']
    #allocation5 [shape = 'u8[8192]{0}', space=vmem, size = 0x2000, scoped, tag = 'input window, operand 1, single buffered']
    #allocation6 [shape = 's32[1]{0}', space=sflag, size = 0x4, scoped, tag = 'scoped memory for tpu_custom_call.1']
    %7 = vsyncpa [#allocation4], 0
    %8 = vsyncpa [#allocation6], 0
    // Predicated region
    $region2: #{tpu_custom_call.1} parent=1 // pred_check
      _
    $region3: #{tpu_custom_call.1} parent=1 // pred_check_branch
      %10 = sbr.rel (0) target = $region5
    $region4: #{tpu_custom_call.1} parent=1 // pred_region
      %s11 = sadd.s32 0, 0
      %p12 = scmp.lt.s32.totalorder %s11, 0
      %s13 = scalar_select %p12, %s11, 0
      %s14 = smul.u32 2, %s13
      %16 = vsyncadd [#allocation4], 0
      %s17 = smul.addr %s14, 8
      %s18 = scalar_lea.hbm %s0, %s17
      %s19 = sshll.u32 %s18, 4
      %s20 = int_to_ptr.hbm [resolvable:$true] %s19
      %s21 = sshll.u32 [#allocation3], 4
      %s22 = int_to_ptr.vmem [resolvable:$true] %s21
      %27 = dma.hbm_to_vmem [thread:$0]  %s20, 256, %s22, [#allocation4], 128, 128, 8
    $region5: #{tpu_custom_call.1} parent=1 // pred_fallthru
      _
    // Predicated region
    $region6: #{tpu_custom_call.1} parent=1 // pred_check
      _
    $region7: #{tpu_custom_call.1} parent=1 // pred_check_branch
      %29 = sbr.rel (0) target = $region9
    $region8: #{tpu_custom_call.1} parent=1 // pred_region
      %s30 = sadd.s32 0, 0
      %p31 = scmp.lt.s32.totalorder %s30, 0
      %s32 = scalar_select %p31, %s30, 0
      %s33 = smul.u32 2, %s32
      %35 = vsyncadd [#allocation6], 0
      %s36 = smul.addr %s33, 8
      %s37 = scalar_lea.hbm %s1, %s36
      %s38 = sshll.u32 %s37, 4
      %s39 = int_to_ptr.hbm [resolvable:$true] %s38
      %s40 = sshll.u32 [#allocation5], 4
      %s41 = int_to_ptr.vmem [resolvable:$true] %s40
      %46 = dma.hbm_to_vmem [thread:$0]  %s39, 256, %s41, [#allocation6], 128, 128, 8
    $region9: #{tpu_custom_call.1} parent=1 // pred_fallthru
      _
    // Predicated region
    $region10: #{tpu_custom_call.1} parent=1 // pred_check
      _
    $region11: #{tpu_custom_call.1} parent=1 // pred_check_branch
      %48 = sbr.rel (0) target = $region13
    $region12: #{tpu_custom_call.1} parent=1 // pred_region
      %50 = dma.done [#allocation4], 256
    $region13: #{tpu_custom_call.1} parent=1 // pred_fallthru
      _
    // Predicated region
    $region14: #{tpu_custom_call.1} parent=1 // pred_check
      _
    $region15: #{tpu_custom_call.1} parent=1 // pred_check_branch
      %52 = sbr.rel (0) target = $region17
    $region16: #{tpu_custom_call.1} parent=1 // pred_region
      %54 = dma.done [#allocation6], 256
    $region17: #{tpu_custom_call.1} parent=1 // pred_fallthru
      _
    %s55 = sadd.s32 0, 0
    %p56 = scmp.lt.s32.totalorder %s55, 0
    %s57 = scalar_select %p56, %s55, 0
    %s58 = smul.u32 2, %s57
    %s59 = sadd.s32 0, 0
    %p60 = scmp.lt.s32.totalorder %s59, 0
    %s61 = scalar_select %p60, %s59, 0
    %s62 = smul.u32 2, %s61
    %p63 = scmp.eq.s32.totalorder 0, 0
    // Predicated region
    $region18: #{tpu_custom_call.1} parent=1 // pred_check
      %p64 = pneg %p63
    $region19: #{tpu_custom_call.1} parent=1 // pred_check_branch
      %66 = sbr.rel (%p64) target = $region21
    $region20: #{tpu_custom_call.1} parent=1 // pred_region
      %vm67 = vcmask 7168
      %68 = vst.msk [vmem:[#allocation2] sm:$0xff] %vm67, 0.0
      %69 = vst.msk [vmem:[#allocation2 + $0x8] sm:$0xff] %vm67, 0.0
    $region21: #{tpu_custom_call.1} parent=1 // pred_fallthru
      _
    %v70 = vld [vmem:[#allocation3] sm:$0xff]
    %v71 = vld [vmem:[#allocation3 + $0x8] sm:$0xff]
    %v72 = vld [vmem:[#allocation5] sm:$0xff]
    %v73 = vld [vmem:[#allocation5 + $0x8] sm:$0xff]
    %74 = vmax.xlane.f32.xlu0 %v70
    %v75 = vpop.xlane.xlu0 %74
    %76 = vmax.xlane.f32.xlu0 %v71
    %v77 = vpop.xlane.xlu0 %76
    %v78 = vsub.f32 %v70, %v75
    %v79 = vsub.f32 %v71, %v77
    %v80 = vmul.f32 %v78, 1.442695
    %v81 = vpow.pop %v80
    %v82 = vmul.f32 %v79, 1.442695
    %v83 = vpow.pop %v82
    %84 = vadd.xlane.f32.xlu0 %v81
    %v85 = vpop.xlane.xlu0 %84
    %86 = vadd.xlane.f32.xlu0 %v83
    %v87 = vpop.xlane.xlu0 %86
    %v88 = vlog2.pop %v85
    %v89 = vmul.f32 %v88, 0.6931472
    %v90 = vlog2.pop %v87
    %v91 = vmul.f32 %v90, 0.6931472
    %v92 = vmul.f32 %v72, %v78
    %v93 = vmul.f32 %v73, %v79
    %94 = vadd.xlane.f32.xlu0 %v92
    %v95 = vpop.xlane.xlu0 %94
    %96 = vadd.xlane.f32.xlu0 %v93
    %v97 = vpop.xlane.xlu0 %96
    %98 = vadd.xlane.f32.xlu0 %v72
    %v99 = vpop.xlane.xlu0 %98
    %100 = vadd.xlane.f32.xlu0 %v73
    %v101 = vpop.xlane.xlu0 %100
    %v102 = vmul.f32 %v99, %v89
    %v103 = vmul.f32 %v101, %v91
    %v104 = vsub.f32 %v102, %v95
    %v105 = vsub.f32 %v103, %v97
    %s106 = sadd.s32 0, 0
    %s107 = smul.u32 %s106, 16
    %v108 = vlaneseq
    %v109 = vshrl.u32 %v108, 7
    %v110 = vadd.s32 %v109, 8
    %v111 = vstv %s107
    %v112 = vadd.s32 %v111, %v109
    %v113 = vadd.s32 %v111, %v110
    %vm114 = vcmp.lt.s32.totalorder %v112, 16
    %vm115 = vcmp.lt.s32.totalorder %v113, 16
    %v116 = vsel %vm114, %v104, 0.0
    %v117 = vsel %vm115, %v105, 0.0
    %v118 = vld [vmem:[#allocation2] sm:$0xff]
    %v119 = vld [vmem:[#allocation2 + $0x8] sm:$0xff]
    %v120 = vadd.f32 %v118, %v116
    %v121 = vadd.f32 %v119, %v117
    %vm122 = vcmask 7168
    %123 = vst.msk [vmem:[#allocation2] sm:$0xff] %vm122, %v120
    %124 = vst.msk [vmem:[#allocation2 + $0x8] sm:$0xff] %vm122, %v121
    // Predicated region
    $region22: #{tpu_custom_call.1} parent=1 // pred_check
      %p125 = pneg %p63
    $region23: #{tpu_custom_call.1} parent=1 // pred_check_branch
      %127 = sbr.rel (%p125) target = $region25
    $region24: #{tpu_custom_call.1} parent=1 // pred_region
      %v128 = vld [vmem:[#allocation2] sm:$0xff]
      %v129 = vld [vmem:[#allocation2 + $0x8] sm:$0xff]
      %v130 = vsel %vm122, %v128, 0.0
      %v131 = vsel %vm122, %v129, 0.0
      %v132 = vadd.f32 %v130, %v131
      %133 = vadd.xlane.f32.xlu0 %v132
      %v134 = vpop.xlane.xlu0 %133
      %v135 = vrot.slane %v134, 4
      %v136 = vadd.f32 %v134, %v135
      %v137 = vrot.slane %v136, 2
      %v138 = vadd.f32 %v136, %v137
      %v139 = vrot.slane %v138, 1
      %v140 = vadd.f32 %v138, %v139
      %s141 = vtos %v140
      %vm142 = vcmp.eq.s32.totalorder %v109, 0
      %v143 = vstv %s141
      %v144 = vsel %vm142, %v143, 0.0
      %145 = vst.msk [vmem:[%s2] sm:$0xff] %vm122, %v144
    $region25: #{tpu_custom_call.1} parent=1 // pred_fallthru
      _
    // Predicated region
    $region26: #{tpu_custom_call.1} parent=1 // pred_check
      _
    $region27: #{tpu_custom_call.1} parent=1 // pred_check_branch
      %147 = sbr.rel (0) target = $region29
    $region28: #{tpu_custom_call.1} parent=1 // pred_region
      _
    $region29: #{tpu_custom_call.1} parent=1 // pred_fallthru
      _
    // Predicated region
    $region30: #{tpu_custom_call.1} parent=1 // pred_check
      _
    $region31: #{tpu_custom_call.1} parent=1 // pred_check_branch
      %149 = sbr.rel (0) target = $region33
    $region32: #{tpu_custom_call.1} parent=1 // pred_region
      _
    $region33: #{tpu_custom_call.1} parent=1 // pred_fallthru
      _
    %150 = vsyncpa [#allocation4], 1
    %151 = vsyncpa [#allocation6], 1

</llo_original>
